<compile_context>
chip_gen: v7x
topology: tpu7x:2x2x1
jax: 0.10.0
libtpu: 0.0.40
codegen_flags: <defaults>
</compile_context>

<pallas_src>
import functools

import jax
import jax.numpy as jnp
from jax.experimental import pallas as pl
from jax.experimental.pallas import tpu as pltpu


def _grayscale_kernel(x_ref, o_ref, *, channels, inv_c):
    # x_ref: (1, C, rows, lane)   o_ref: (1, 1, rows, lane)
    # Channel mean = (C-1) elementwise vreg adds on the VPU; the f32 convert is
    # fused into each add so only one f32 accumulator tile is live.
    acc = x_ref[0, 0].astype(jnp.float32)
    for c in range(1, channels):
        acc = acc + x_ref[0, c].astype(jnp.float32)
    o_ref[0, 0] = (acc * jnp.float32(inv_c)).astype(o_ref.dtype)


def _sublane_multiple(dtype):
    itemsize = jnp.dtype(dtype).itemsize
    if itemsize >= 4:
        return 8
    if itemsize == 2:
        return 16
    return 32


def _choose_lane_width(hw):
    """Largest multiple-of-128 divisor of hw (<=1024), preferring one that
    leaves >= 8 rows (sublane-dense).  Returns None if 128 does not divide hw."""
    cands = [128 * m for m in range(8, 0, -1)]          # 1024 ... 128
    divs = [c for c in cands if hw % c == 0]
    if not divs:
        return None
    for c in divs:
        if hw // c >= 8:
            return c
    return divs[-1]


def _choose_tile_rows(n, hi, channels, lane, dtype,
                      vmem_block_budget=24 * 1024 * 1024):
    """Row-tile: as large as fits the (double-buffered) VMEM budget, rounded to
    the dtype sublane multiple; split when N==1 so >=2 parallel grid steps."""
    itemsize = jnp.dtype(dtype).itemsize
    sub = _sublane_multiple(dtype)
    # Double-buffered input + output blocks, plus one f32 accumulator tile.
    per_row = 2 * (channels + 1) * lane * itemsize + 4 * lane
    max_rows = max(sub, (vmem_block_budget // per_row) // sub * sub)
    tile = hi if hi <= max_rows else max_rows            # full-extent is legal
    # v7x has 2 TensorCores: keep at least 2 steps on the parallel grid.
    if n * pl.cdiv(hi, tile) < 2 and hi > sub:
        half = (hi + 1) // 2
        tile = max(sub, -(-half // sub) * sub)
    return tile


def grayscale(x, *, vmem_block_budget=24 * 1024 * 1024,
              vmem_limit_bytes=40 * 1024 * 1024):
    """Pallas TPU GrayscaleLayer.forward: (N, C, H, W) -> (N, 1, H, W)."""
    N, C, H, W = x.shape
    hw = H * W
    itemsize = jnp.dtype(x.dtype).itemsize

    lane = _choose_lane_width(hw)
    if lane is not None:
        # Fused-HW view: lane-dense output regardless of W.
        hi = hw // lane
        x_view = x.reshape(N, C, hi, lane)
    else:
        # H*W not divisible by 128: keep original layout (full-extent last dim).
        hi, lane = H, W
        x_view = x

    tile = _choose_tile_rows(N, hi, C, lane, x.dtype, vmem_block_budget)
    n_t = pl.cdiv(hi, tile)                               # ragged tail OK

    kernel = functools.partial(_grayscale_kernel, channels=C, inv_c=1.0 / C)

    in_block = (1, C, tile, lane)
    in_bytes = C * tile * lane * itemsize
    if in_bytes < (1 << 20) and N * n_t >= 8:
        # Many small steps: deepen input buffering to hide DMA issue latency.
        in_spec = pl.BlockSpec(in_block, lambda n, t: (n, 0, t, 0),
                               pipeline_mode=pl.Buffered(3))
    else:
        in_spec = pl.BlockSpec(in_block, lambda n, t: (n, 0, t, 0))

    cost = pl.CostEstimate(
        flops=N * C * hw,                                 # (C-1) adds + 1 mul
        transcendentals=0,
        bytes_accessed=(C + 1) * N * hw * itemsize,
    )

    out = pl.pallas_call(
        kernel,
        out_shape=jax.ShapeDtypeStruct((N, 1, hi, lane), x.dtype),
        grid_spec=pltpu.PrefetchScalarGridSpec(
            num_scalar_prefetch=0,
            grid=(N, n_t),
            in_specs=[in_spec],
            out_specs=pl.BlockSpec((1, 1, tile, lane),
                                   lambda n, t: (n, 0, t, 0)),
        ),
        compiler_params=pltpu.CompilerParams(
            dimension_semantics=("parallel", "parallel"),
            vmem_limit_bytes=vmem_limit_bytes,
        ),
        cost_estimate=cost,
    )(x_view)

    return out.reshape(N, 1, H, W)


def grayscale_ref(x):
    return jnp.mean(x.astype(jnp.float32), axis=1, keepdims=True).astype(x.dtype)


if __name__ == "__main__":
    key = jax.random.PRNGKey(0)
    k1, k2, k3 = jax.random.split(key, 3)

    # Primary small example matching the module's (N, C, H, W) input.
    x = jax.random.normal(k1, (2, 4, 16, 16), dtype=jnp.float32)
    y = jax.block_until_ready(grayscale(x))
    assert y.shape == (2, 1, 16, 16), y.shape
    assert jnp.allclose(y, grayscale_ref(x), rtol=1e-5, atol=1e-6)

    # Ragged row-tile (pl.cdiv tail) + N==1 core-balance split path.
    x2 = jax.random.normal(k2, (1, 3, 40, 32), dtype=jnp.float32)
    y2 = jax.block_until_ready(grayscale(x2))
    assert y2.shape == (1, 1, 40, 32), y2.shape
    assert jnp.allclose(y2, grayscale_ref(x2), rtol=1e-5, atol=1e-6)

    # H*W not divisible by 128 -> fallback (original-layout) path.
    x3 = jax.random.normal(k3, (2, 3, 7, 20), dtype=jnp.float32)
    y3 = jax.block_until_ready(grayscale(x3))
    assert y3.shape == (2, 1, 7, 20), y3.shape
    assert jnp.allclose(y3, grayscale_ref(x3), rtol=1e-5, atol=1e-6)

    print("KERNEL_OK")
</pallas_src>

<mosaic_0001>
module attributes {stable_mosaic.version = 11 : i64} {
  func.func @_grayscale_kernel(%arg0: i32, %arg1: i32, %arg2: memref<1x4x2x128xf32, #tpu.memory_space<vmem>>, %arg3: memref<1x1x2x128xf32, #tpu.memory_space<vmem>>) attributes {dimension_semantics = [#tpu.dimension_semantics<parallel>, #tpu.dimension_semantics<parallel>], iteration_bounds = array<i64: 2, 1>, scalar_prefetch = 0 : i64, scratch_operands = 0 : i64, tpu.core_type = #tpu.core_type<tc>, window_params = [{transform_indices = @transform_0, window_bounds = array<i64: 1, 4, 2, 128>}, {transform_indices = @transform_1, window_bounds = array<i64: 1, 1, 2, 128>}]} {
    %c0 = arith.constant 0 : index
    %c0_0 = arith.constant 0 : index
    %c0_1 = arith.constant 0 : index
    %c0_2 = arith.constant 0 : index
    %0 = vector.load %arg2[%c0, %c0_0, %c0_1, %c0_2] : memref<1x4x2x128xf32, #tpu.memory_space<vmem>>, vector<1x1x2x128xf32>
    %1 = vector.shape_cast %0 : vector<1x1x2x128xf32> to vector<2x128xf32>
    %c0_3 = arith.constant 0 : index
    %c1 = arith.constant 1 : index
    %c0_4 = arith.constant 0 : index
    %c0_5 = arith.constant 0 : index
    %2 = vector.load %arg2[%c0_3, %c1, %c0_4, %c0_5] : memref<1x4x2x128xf32, #tpu.memory_space<vmem>>, vector<1x1x2x128xf32>
    %3 = vector.shape_cast %2 : vector<1x1x2x128xf32> to vector<2x128xf32>
    %4 = arith.addf %1, %3 : vector<2x128xf32>
    %c0_6 = arith.constant 0 : index
    %c2 = arith.constant 2 : index
    %c0_7 = arith.constant 0 : index
    %c0_8 = arith.constant 0 : index
    %5 = vector.load %arg2[%c0_6, %c2, %c0_7, %c0_8] : memref<1x4x2x128xf32, #tpu.memory_space<vmem>>, vector<1x1x2x128xf32>
    %6 = vector.shape_cast %5 : vector<1x1x2x128xf32> to vector<2x128xf32>
    %7 = arith.addf %4, %6 : vector<2x128xf32>
    %c0_9 = arith.constant 0 : index
    %c3 = arith.constant 3 : index
    %c0_10 = arith.constant 0 : index
    %c0_11 = arith.constant 0 : index
    %8 = vector.load %arg2[%c0_9, %c3, %c0_10, %c0_11] : memref<1x4x2x128xf32, #tpu.memory_space<vmem>>, vector<1x1x2x128xf32>
    %9 = vector.shape_cast %8 : vector<1x1x2x128xf32> to vector<2x128xf32>
    %10 = arith.addf %7, %9 : vector<2x128xf32>
    %cst = arith.constant 2.500000e-01 : f32
    %11 = vector.broadcast %cst : f32 to vector<2x128xf32>
    %12 = arith.mulf %10, %11 : vector<2x128xf32>
    %c0_12 = arith.constant 0 : index
    %c0_13 = arith.constant 0 : index
    %c0_14 = arith.constant 0 : index
    %c0_15 = arith.constant 0 : index
    %13 = vector.load %arg3[%c0_12, %c0_13, %c0_14, %c0_15] : memref<1x1x2x128xf32, #tpu.memory_space<vmem>>, vector<1x1x2x128xf32>
    %14 = vector.shape_cast %13 : vector<1x1x2x128xf32> to vector<2x128xf32>
    %15 = vector.shape_cast %12 : vector<2x128xf32> to vector<1x1x2x128xf32>
    tpu.vector_store %arg3[%c0_12, %c0_13, %c0_14, %c0_15], %15 {strides = array<i32>} : memref<1x1x2x128xf32, #tpu.memory_space<vmem>>, vector<1x1x2x128xf32>,
    return
  }
  func.func @transform_0(%arg0: i32, %arg1: i32) -> (i32, i32, i32, i32) {
    %c0_i32 = arith.constant 0 : i32
    %c0_i32_0 = arith.constant 0 : i32
    %c0_i32_1 = arith.constant 0 : i32
    return %arg0, %c0_i32, %arg1, %c0_i32_0 : i32, i32, i32, i32
  }
  func.func @transform_1(%arg0: i32, %arg1: i32) -> (i32, i32, i32, i32) {
    %c0_i32 = arith.constant 0 : i32
    %c0_i32_0 = arith.constant 0 : i32
    %c0_i32_1 = arith.constant 0 : i32
    return %arg0, %c0_i32, %arg1, %c0_i32_0 : i32, i32, i32, i32
  }
}

</mosaic_0001>

<llo_original>
// kernel: tpu_custom_call.1
$region0: #{tpu_custom_call.1}
  #allocation0 [shape = 'u32[]', space=smem, size = 0x4, offset = 0x4, fixed_abs, tag = 'smem constant byte address 0x4 - core index']
  #allocation1 [shape = 'u32[144,128]{1,0:T(1,128)}', space=vmem, size = 0x12000, scoped, tag = 'internal scratch']
  %s0 = inlined_call_operand.hbm [shape: f32[2,4,2,128], index: 0, kind: input, shape index: {}]
  %s1 = inlined_call_operand.hbm [shape: f32[2,1,2,128], index: 1, kind: output, shape index: {}]
  %s2 = sld [smem:[#allocation0]]
  $region41: #{tpu_custom_call.1} parent=0
    _
  %s4 = ssub.s32 1, %s2
  %s5 = scalar_select 0, %s4, %s2
  $region1: #{tpu_custom_call.1} parent=0
    #allocation2 [shape = 'u8[8192]{0}', space=vmem, size = 0x2000, scoped, tag = 'input window, operand 0']
    #allocation3 [shape = 's32[2]{0}', space=sflag, size = 0x8, scoped, tag = 'scoped memory for tpu_custom_call.1']
    #allocation4 [shape = 's32[2]{0}', space=sflag, size = 0x8, scoped, tag = 'scoped memory for tpu_custom_call.1']
    #allocation5 [shape = 'u8[2048]{0}', space=vmem, size = 0x800, scoped, tag = 'output window, operand 0']
    %6 = vsyncpa [#allocation3], 0
    %s7 = scalar_lea.sflag [#allocation3], 1
    %8 = vsyncpa %s7, 0
    %9 = vsyncpa [#allocation4], 0
    %s10 = scalar_lea.sflag [#allocation4], 1
    %11 = vsyncpa %s10, 0
    loop: start=0, step=1, limit=4
    $region2: #{tpu_custom_call.1} parent=1 // loop_pre_header
      _
    $region3: #{tpu_custom_call.1} parent=1 // loop_header
      %s13 = sphi 0, %s17
      %p14 = scmp.ge.s32.totalorder %s13, 4
      %s20 = sphi 0, %s32
      %s21 = sphi 0, %s28
      %s22 = sphi 0, %s20
      %s23 = sphi 0, %s21
      %s24 = sphi 0, %s22
      %s25 = sphi 0, %s23
      %s37 = sphi 0, %s39
      %s40 = sphi 0, %s37
      %s41 = sphi 0, %s40
      %s57 = sphi 0, %s41
      %s65 = sphi 0, %s67
      %s68 = sphi 0, %s65
      %s69 = sphi 0, %s68
      %s85 = sphi 0, %s69
    $region4: #{tpu_custom_call.1} parent=1 // loop_header_branch
      %16 = sbr.rel (%p14) target = $region8
    $region5: #{tpu_custom_call.1} parent=1 // loop_body
      %s18 = ssub.s32 %s13, 1
      %s19 = ssub.s32 %s13, 2
      %s26 = sadd.s32 1, %s21
      %p27 = scmp.ge.s32.totalorder %s26, 1
      %s28 = scalar_select %p27, 0, %s26
      %s29 = sadd.s32 1, %s20
      %s30 = scalar_select %p27, %s29, %s20
      %p31 = scmp.ge.s32.totalorder %s30, 2
      %s32 = scalar_select %p31, 0, %s30
      %s33 = ssub.s32 %s20, %s32
      %s34 = ssub.s32 %s21, %s28
      %s35 = sor.u32 %s33, %s34
      %p36 = scmp.eq.s32.totalorder %s35, 0
      %s38 = sadd.s32 %s37, 1
      %s39 = scalar_select %p36, %s37, %s38
      %p42 = pneg %p36
      %p43 = scmp.eq.s32.totalorder %s13, 1
      %p44 = por %p42, %p43
      %p45 = scmp.ne.s32.totalorder %s37, %s40
      %p46 = scmp.eq.s32.totalorder %s13, 0
      %p47 = por %p45, %p46
      %p48 = scmp.ne.s32.totalorder %s37, %s40
      %p49 = scmp.eq.s32.totalorder %s18, 1
      %p50 = por %p48, %p49
      %p51 = scmp.ne.s32.totalorder %s40, %s41
      %p52 = scmp.eq.s32.totalorder %s18, 0
      %p53 = por %p51, %p52
      %p54 = scmp.ne.s32.totalorder %s40, %s41
      %p55 = scmp.eq.s32.totalorder %s19, 1
      %p56 = por %p54, %p55
      %p58 = scmp.ne.s32.totalorder %s41, %s57
      %p59 = scmp.eq.s32.totalorder %s19, 0
      %p60 = por %p58, %p59
      %s61 = ssub.s32 %s20, %s32
      %s62 = ssub.s32 %s21, %s28
      %s63 = sor.u32 %s61, %s62
      %p64 = scmp.eq.s32.totalorder %s63, 0
      %s66 = sadd.s32 %s65, 1
      %s67 = scalar_select %p64, %s65, %s66
      %p70 = pneg %p64
      %p71 = scmp.eq.s32.totalorder %s13, 1
      %p72 = por %p70, %p71
      %p73 = scmp.ne.s32.totalorder %s65, %s68
      %p74 = scmp.eq.s32.totalorder %s13, 0
      %p75 = por %p73, %p74
      %p76 = scmp.ne.s32.totalorder %s65, %s68
      %p77 = scmp.eq.s32.totalorder %s18, 1
      %p78 = por %p76, %p77
      %p79 = scmp.ne.s32.totalorder %s68, %s69
      %p80 = scmp.eq.s32.totalorder %s18, 0
      %p81 = por %p79, %p80
      %p82 = scmp.ne.s32.totalorder %s68, %s69
      %p83 = scmp.eq.s32.totalorder %s19, 1
      %p84 = por %p82, %p83
      %p86 = scmp.ne.s32.totalorder %s69, %s85
      %p87 = scmp.eq.s32.totalorder %s19, 0
      %p88 = por %p86, %p87
      %p89 = scmp.le.s32.totalorder 1, %s13
      %p90 = scmp.lt.s32.totalorder %s13, 3
      %p91 = pnand %p89, %p90
      %p92 = pneg %p91
      // Predicated region
      $region9: #{tpu_custom_call.1} parent=5 // pred_check
        _
      $region10: #{tpu_custom_call.1} parent=5 // pred_check_branch
        %94 = sbr.rel (%p91) target = $region12
      $region11: #{tpu_custom_call.1} parent=5 // pred_region
        %s95 = ssub.s32 %s13, 1
      $region12: #{tpu_custom_call.1} parent=5 // pred_fallthru
        _
      %p96 = scmp.lt.s32.totalorder %s13, 2
      // Predicated region
      $region13: #{tpu_custom_call.1} parent=5 // pred_check
        %p97 = pneg %p96
      $region14: #{tpu_custom_call.1} parent=5 // pred_check_branch
        %99 = sbr.rel (%p97) target = $region16
      $region15: #{tpu_custom_call.1} parent=5 // pred_region
        // Predicated region
        $region17: #{tpu_custom_call.1} parent=15 // pred_check
          %p100 = pneg %p47
        $region18: #{tpu_custom_call.1} parent=15 // pred_check_branch
          %102 = sbr.rel (%p100) target = $region20
        $region19: #{tpu_custom_call.1} parent=15 // pred_region
          %s103 = sand.u32 %s37, 1
          %s104 = scalar_lea.sflag [#allocation3], %s103
          %s105 = sand.u32 %s37, 1
          %s106 = smul.addr %s105, 8
          %s107 = scalar_lea.vmem [#allocation2], %s106
          %s109 = ssub.s32 128, 128
          %110 = vsyncadd %s104, %s109
          %s111 = smul.addr %s20, 4
          %s112 = sadd.s32 %s21, %s111
          %s113 = smul.addr %s112, 32
          %s114 = scalar_lea.hbm %s0, %s113
          %s115 = sshll.u32 %s107, 4
          %s116 = int_to_ptr.vmem [resolvable:$true] %s115
          %121 = dma.hbm_to_vmem [thread:$0]  %s114, 128, %s116, %s104, 32, 32, 2
        $region20: #{tpu_custom_call.1} parent=15 // pred_fallthru
          _
      $region16: #{tpu_custom_call.1} parent=5 // pred_fallthru
        _
      %p122 = scmp.le.s32.totalorder 1, %s13
      %p123 = scmp.lt.s32.totalorder %s13, 3
      %p124 = pnand %p122, %p123
      %p125 = pneg %p124
      // Predicated region
      $region21: #{tpu_custom_call.1} parent=5 // pred_check
        _
      $region22: #{tpu_custom_call.1} parent=5 // pred_check_branch
        %127 = sbr.rel (%p124) target = $region24
      $region23: #{tpu_custom_call.1} parent=5 // pred_region
        %s128 = ssub.s32 %s13, 1
        %s129 = sand.u32 %s40, 1
        %s130 = scalar_lea.sflag [#allocation3], %s129
        %s131 = sand.u32 %s40, 1
        %s132 = smul.addr %s131, 8
        %s133 = scalar_lea.vmem [#allocation2], %s132
        // Predicated region
        $region25: #{tpu_custom_call.1} parent=23 // pred_check
          %p134 = pneg %p53
        $region26: #{tpu_custom_call.1} parent=23 // pred_check_branch
          %136 = sbr.rel (%p134) target = $region28
        $region27: #{tpu_custom_call.1} parent=23 // pred_region
          %137 = dma.done %s130, 128
        $region28: #{tpu_custom_call.1} parent=23 // pred_fallthru
          _
        %s138 = sand.u32 %s40, 1
        %s139 = scalar_lea.sflag [#allocation3], %s138
        %s140 = sand.u32 %s40, 1
        %s141 = smul.addr %s140, 8
        %s142 = scalar_lea.vmem [#allocation2], %s141
        %p143 = pneg %p53
        %p144 = pneg %p50
        %p145 = pneg %p81
        %p146 = pneg %p78
        %s147 = sand.u32 %s68, 1
        %s148 = scalar_lea.sflag [#allocation4], %s147
        %s149 = sand.u32 %s68, 1
        %s150 = smul.addr %s149, 2
        %s151 = scalar_lea.vmem [#allocation5], %s150
        %v152 = vld [vmem:[%s133] sm:$0x3]
        %s153 = scalar_lea.vmem %s133, 2 [#allocation2]
        %v154 = vld [vmem:[%s153] sm:$0x3]
        %v155 = vadd.f32 %v152, %v154
        %s156 = scalar_lea.vmem %s133, 4 [#allocation2]
        %v157 = vld [vmem:[%s156] sm:$0x3]
        %v158 = vadd.f32 %v155, %v157
        %s159 = scalar_lea.vmem %s133, 6 [#allocation2]
        %v160 = vld [vmem:[%s159] sm:$0x3]
        %v161 = vadd.f32 %v158, %v160
        %v162 = vmul.f32 %v161, 0.25
        %163 = vst [vmem:[%s151] sm:$0x3] %v162
        %s164 = sand.u32 %s68, 1
        %s165 = scalar_lea.sflag [#allocation4], %s164
        %s166 = sand.u32 %s68, 1
        %s167 = smul.addr %s166, 2
        %s168 = scalar_lea.vmem [#allocation5], %s167
        // Predicated region
        $region29: #{tpu_custom_call.1} parent=23 // pred_check
          %p169 = pneg %p78
        $region30: #{tpu_custom_call.1} parent=23 // pred_check_branch
          %171 = sbr.rel (%p169) target = $region32
        $region31: #{tpu_custom_call.1} parent=23 // pred_region
          %s173 = ssub.s32 32, 32
          %174 = vsyncadd %s165, %s173
          %s175 = sadd.s32 %s23, %s22
          %s176 = smul.addr %s175, 32
          %s177 = scalar_lea.hbm %s1, %s176
          %s179 = sshll.u32 %s168, 4
          %s180 = int_to_ptr.vmem [resolvable:$true] %s179
          %182 = dma.vmem_to_hbm [thread:$0]  %s180, 32, %s177, %s165
        $region32: #{tpu_custom_call.1} parent=23 // pred_fallthru
          _
      $region24: #{tpu_custom_call.1} parent=5 // pred_fallthru
        _
      %p183 = scmp.le.s32.totalorder 2, %s13
      // Predicated region
      $region33: #{tpu_custom_call.1} parent=5 // pred_check
        %p184 = pneg %p183
      $region34: #{tpu_custom_call.1} parent=5 // pred_check_branch
        %186 = sbr.rel (%p184) target = $region36
      $region35: #{tpu_custom_call.1} parent=5 // pred_region
        %s187 = ssub.s32 %s13, 2
        // Predicated region
        $region37: #{tpu_custom_call.1} parent=35 // pred_check
          %p188 = pneg %p84
        $region38: #{tpu_custom_call.1} parent=35 // pred_check_branch
          %190 = sbr.rel (%p188) target = $region40
        $region39: #{tpu_custom_call.1} parent=35 // pred_region
          %s191 = sand.u32 %s69, 1
          %s192 = scalar_lea.sflag [#allocation4], %s191
          %s193 = sand.u32 %s69, 1
          %s194 = smul.addr %s193, 2
          %s195 = scalar_lea.vmem [#allocation5], %s194
          %196 = dma.done %s192, 32
        $region40: #{tpu_custom_call.1} parent=35 // pred_fallthru
          _
      $region36: #{tpu_custom_call.1} parent=5 // pred_fallthru
        _
    $region6: #{tpu_custom_call.1} parent=1 // loop_footer
      %s17 = sadd.s32 1, %s13
    $region7: #{tpu_custom_call.1} parent=1 // loop_footer_branch
      %12 = sbr.rel target = $region3
    $region8: #{tpu_custom_call.1} parent=1 // loop_exit
      _
    %197 = vsyncpa [#allocation3], 1
    %s198 = scalar_lea.sflag [#allocation3], 1
    %199 = vsyncpa %s198, 1
    %200 = vsyncpa [#allocation4], 1
    %s201 = scalar_lea.sflag [#allocation4], 1
    %202 = vsyncpa %s201, 1

</llo_original>
